<compile_context>
chip_gen: v7x
topology: tpu7x:2x2x1
jax: 0.10.0
libtpu: 0.0.40
codegen_flags: <defaults>
</compile_context>

<pallas_src>
import functools

import jax
import jax.numpy as jnp
import numpy as np
from jax.experimental import pallas as pl
from jax.experimental.pallas import tpu as pltpu

EPS = 1e-12


# --------------------------------------------------------------------------
# Kernel 1: power iteration + sigma, emitting the (alpha/sigma)-scaled weight
# --------------------------------------------------------------------------
def _power_iter_scale_kernel(w2d_ref, w_taps_ref, u_ref,
                             u_out_ref, v_out_ref, w_scaled_ref, *, alpha):
    # w2d_ref:    (OC, Wd)        flattened weight, Wd = C*KH*KW
    # w_taps_ref: (KH*KW, OC, C)  per-tap weight layout used by the conv kernel
    # u_ref:      (1, OC)
    w = w2d_ref[...].astype(jnp.float32)
    u = u_ref[...].astype(jnp.float32)

    # v = l2normalize(W^T u), computed as u @ W (no transpose materialized).
    v_raw = jnp.dot(u, w, preferred_element_type=jnp.float32)          # (1, Wd)
    v = v_raw / (jnp.sqrt(jnp.sum(v_raw * v_raw)) + EPS)

    # u_raw = W v, via dot_general contracting the last dims (no transpose).
    u_raw = jax.lax.dot_general(v, w, (((1,), (1,)), ((), ())),
                                preferred_element_type=jnp.float32)    # (1, OC)
    ssum = jnp.sum(u_raw * u_raw)
    u_norm = jnp.sqrt(ssum)
    u_new = u_raw / (u_norm + EPS)

    # sigma = u_new . (W v) = ||u_raw||^2 / (||u_raw|| + eps)  -- no 3rd matmul.
    sigma = ssum / (u_norm + EPS)

    u_out_ref[...] = u_new
    v_out_ref[...] = v
    # Fold alpha / sigma into the conv weight here, where it is already resident,
    # so the hot conv kernel needs neither sigma nor a per-tile scale multiply.
    w_scaled_ref[...] = w_taps_ref[...] * (alpha / sigma)


# --------------------------------------------------------------------------
# Kernel 2: im2col-free conv as KH*KW shifted matmuls on a resident image tile
# --------------------------------------------------------------------------
def _conv_taps_kernel(x_ref, w_ref, b_ref, out_ref, *, kh, kw, h, w_sp, pad,
                      compute_dtype):
    # x_ref:   (1, C, H*W + 2*pad)  one image, spatial flattened + zero halo
    # w_ref:   (KH*KW, OC, C)       pre-scaled (alpha/sigma) weight taps
    # b_ref:   (OC, 1)              bias
    # out_ref: (1, OC, H*W)         lane-dense output block (NCHW after reshape)
    _, oc, hw = out_ref.shape
    xp = x_ref[0].astype(compute_dtype)                                # (C, L)
    col = jax.lax.broadcasted_iota(jnp.int32, (1, hw), 1) % w_sp       # lane -> j

    acc = b_ref[...].astype(jnp.float32) + jnp.zeros((oc, hw), jnp.float32)
    for dw in range(kw):
        d = dw - kw // 2
        part = jnp.zeros((oc, hw), jnp.float32)
        for dh in range(kh):
            s = (dh - kh // 2) * w_sp + d                              # lane shift
            xs = xp[:, pad + s: pad + s + hw]                          # static slice
            part = part + jnp.dot(w_ref[dh * kw + dw].astype(compute_dtype), xs,
                                  preferred_element_type=jnp.float32)
        if d != 0:
            # Zero out lanes where this column tap wrapped across an image row.
            part = jnp.where((col + d >= 0) & (col + d < w_sp), part, 0.0)
        acc = acc + part
    out_ref[0] = acc.astype(out_ref.dtype)


# --------------------------------------------------------------------------
# Wrapper: SpectralNorm(nn.Conv2d(C, OC, (KH,KW), stride 1, 'same')) forward
# --------------------------------------------------------------------------
def spectral_norm_conv2d_forward(x, w_bar, bias, u, alpha=1.6,
                                 compute_dtype=jnp.float32):
    """Returns (y_NCHW, updated_u, updated_v)."""
    N, C, H, W = x.shape
    OC, IC, KH, KW = w_bar.shape
    assert IC == C and KH % 2 == 1 and KW % 2 == 1
    Wd = IC * KH * KW
    HW = H * W
    P = (KH // 2) * W + (KW // 2)          # halo length in the flattened layout
    L = HW + 2 * P

    # ---- tiny kernel: power iteration + fused weight scaling ----
    w2d = w_bar.reshape(OC, Wd).astype(jnp.float32)
    w_taps = jnp.transpose(w_bar, (2, 3, 0, 1)).reshape(KH * KW, OC, IC)
    u_row = u.reshape(1, OC).astype(jnp.float32)

    u_new, v_new, w_scaled = pl.pallas_call(
        functools.partial(_power_iter_scale_kernel, alpha=float(alpha)),
        out_shape=(
            jax.ShapeDtypeStruct((1, OC), jnp.float32),          # updated u
            jax.ShapeDtypeStruct((1, Wd), jnp.float32),          # updated v
            jax.ShapeDtypeStruct((KH * KW, OC, IC), jnp.float32),  # scaled W
        ),
        in_specs=[
            pl.BlockSpec((OC, Wd), lambda: (0, 0)),
            pl.BlockSpec((KH * KW, OC, IC), lambda: (0, 0, 0)),
            pl.BlockSpec((1, OC), lambda: (0, 0)),
        ],
        out_specs=(
            pl.BlockSpec((1, OC), lambda: (0, 0)),
            pl.BlockSpec((1, Wd), lambda: (0, 0)),
            pl.BlockSpec((KH * KW, OC, IC), lambda: (0, 0, 0)),
        ),
    )(w2d, w_taps.astype(jnp.float32), u_row)

    # ---- hot path: im2col-free conv, one image per grid step ----
    # Flatten spatial dims (metadata-only reshape) and add a small zero halo so
    # every conv tap becomes a contiguous static lane slice inside the kernel.
    x_buf = jnp.pad(x.reshape(N, C, HW).astype(jnp.float32),
                    ((0, 0), (0, 0), (P, P)))                    # (N, C, L)

    out_flat = pl.pallas_call(
        functools.partial(_conv_taps_kernel, kh=KH, kw=KW, h=H, w_sp=W, pad=P,
                          compute_dtype=compute_dtype),
        out_shape=jax.ShapeDtypeStruct((N, OC, HW), jnp.float32),
        grid=(N,),
        in_specs=[
            pl.BlockSpec((1, C, L), lambda n: (n, 0, 0)),
            pl.BlockSpec((KH * KW, OC, IC), lambda n: (0, 0, 0)),
            pl.BlockSpec((OC, 1), lambda n: (0, 0)),
        ],
        out_specs=pl.BlockSpec((1, OC, HW), lambda n: (n, 0, 0)),
        compiler_params=pltpu.CompilerParams(
            dimension_semantics=("parallel",)),
    )(x_buf, w_scaled, bias.reshape(OC, 1).astype(jnp.float32))

    y = out_flat.reshape(N, OC, H, W)      # metadata-only reshape -> NCHW
    return y, u_new.reshape(OC), v_new.reshape(Wd)


# --------------------------------------------------------------------------
# Pure-JAX reference (mirrors the PyTorch math) for a sanity check
# --------------------------------------------------------------------------
def _reference_forward(x, w_bar, bias, u, alpha):
    Hh = w_bar.shape[0]
    w2d = w_bar.reshape(Hh, -1)
    v = w2d.T @ u
    v = v / (jnp.linalg.norm(v) + EPS)
    u2 = w2d @ v
    u2 = u2 / (jnp.linalg.norm(u2) + EPS)
    sigma = u2 @ (w2d @ v)
    w = alpha * w_bar / sigma
    y = jax.lax.conv_general_dilated(
        x, w, window_strides=(1, 1), padding="SAME",
        dimension_numbers=("NCHW", "OIHW", "NCHW"))
    return y + bias[None, :, None, None]


if __name__ == "__main__":
    key = jax.random.PRNGKey(0)
    k1, k2, k3, k4 = jax.random.split(key, 4)

    # small shapes consistent with the module: Conv2d(4 -> 8, 3x3, pad 1)
    N, C, H, W = 2, 4, 16, 16
    OC, KH, KW = 8, 3, 3
    alpha = 1.6

    x = jax.random.normal(k1, (N, C, H, W), jnp.float32)
    w_bar = jax.random.normal(k2, (OC, C, KH, KW), jnp.float32) * 0.1
    bias = jax.random.normal(k3, (OC,), jnp.float32) * 0.1
    u0 = jax.random.normal(k4, (OC,), jnp.float32)
    u0 = u0 / (jnp.linalg.norm(u0) + EPS)
    # The module's v buffer is recomputed before first use (power_iterations=1),
    # so its initial value never affects the forward; we just return the new v.

    y, u_new, v_new = spectral_norm_conv2d_forward(x, w_bar, bias, u0, alpha)
    y = jax.block_until_ready(y)

    ref = _reference_forward(x, w_bar, bias, u0, alpha)
    np.testing.assert_allclose(np.asarray(y), np.asarray(ref),
                               rtol=1e-4, atol=1e-4)
    print("KERNEL_OK")
</pallas_src>

<mosaic_0001>
module attributes {stable_mosaic.version = 11 : i64} {
  func.func @_power_iter_scale_kernel(%arg0: memref<8x36xf32, #tpu.memory_space<vmem>>, %arg1: memref<9x8x4xf32, #tpu.memory_space<vmem>>, %arg2: memref<1x8xf32, #tpu.memory_space<vmem>>, %arg3: memref<1x8xf32, #tpu.memory_space<vmem>>, %arg4: memref<1x36xf32, #tpu.memory_space<vmem>>, %arg5: memref<9x8x4xf32, #tpu.memory_space<vmem>>) attributes {dimension_semantics = [], scalar_prefetch = 0 : i64, scratch_operands = 0 : i64, tpu.core_type = #tpu.core_type<tc>} {
    %c0 = arith.constant 0 : index
    %c0_0 = arith.constant 0 : index
    %0 = vector.load %arg0[%c0, %c0_0] : memref<8x36xf32, #tpu.memory_space<vmem>>, vector<8x36xf32>
    %c0_1 = arith.constant 0 : index
    %c0_2 = arith.constant 0 : index
    %1 = vector.load %arg2[%c0_1, %c0_2] : memref<1x8xf32, #tpu.memory_space<vmem>>, vector<1x8xf32>
    %cst = arith.constant dense<0.000000e+00> : vector<1x36xf32>
    %2 = tpu.matmul %1, %0, %cst {dimension_numbers = #tpu.dot_dimension_numbers<[1], [0], [0], [1], [0, 0, 1, 1], [], []>} : vector<1x8xf32>, vector<8x36xf32>, vector<1x36xf32> -> vector<1x36xf32>
    %3 = arith.mulf %2, %2 : vector<1x36xf32>
    %4 = vector.shape_cast %3 : vector<1x36xf32> to vector<1x1x36xf32>
    %cst_3 = arith.constant dense<0.000000e+00> : vector<1xf32>
    %5 = vector.multi_reduction <add>, %4, %cst_3 [1, 2] : vector<1x1x36xf32> to vector<1xf32>
    %6 = vector.shape_cast %5 : vector<1xf32> to vector<1x1x1xf32>
    %7 = vector.extract %6[0, 0, 0] : f32 from vector<1x1x1xf32>
    %8 = math.sqrt %7 : f32
    %cst_4 = arith.constant 9.99999996E-13 : f32
    %9 = arith.addf %8, %cst_4 : f32
    %10 = vector.broadcast %9 : f32 to vector<1x36xf32>
    %11 = arith.divf %2, %10 : vector<1x36xf32>
    %cst_5 = arith.constant dense<0.000000e+00> : vector<1x8xf32>
    %12 = tpu.matmul %11, %0, %cst_5 {dimension_numbers = #tpu.dot_dimension_numbers<[1], [1], [0], [0], [0, 0, 1, 0], [], []>} : vector<1x36xf32>, vector<8x36xf32>, vector<1x8xf32> -> vector<1x8xf32>
    %13 = arith.mulf %12, %12 : vector<1x8xf32>
    %14 = vector.shape_cast %13 : vector<1x8xf32> to vector<1x1x8xf32>
    %cst_6 = arith.constant dense<0.000000e+00> : vector<1xf32>
    %15 = vector.multi_reduction <add>, %14, %cst_6 [1, 2] : vector<1x1x8xf32> to vector<1xf32>
    %16 = vector.shape_cast %15 : vector<1xf32> to vector<1x1x1xf32>
    %17 = vector.extract %16[0, 0, 0] : f32 from vector<1x1x1xf32>
    %18 = math.sqrt %17 : f32
    %cst_7 = arith.constant 9.99999996E-13 : f32
    %19 = arith.addf %18, %cst_7 : f32
    %20 = vector.broadcast %19 : f32 to vector<1x8xf32>
    %21 = arith.divf %12, %20 : vector<1x8xf32>
    %cst_8 = arith.constant 9.99999996E-13 : f32
    %22 = arith.addf %18, %cst_8 : f32
    %23 = arith.divf %17, %22 : f32
    %c0_9 = arith.constant 0 : index
    %c0_10 = arith.constant 0 : index
    %24 = vector.load %arg3[%c0_9, %c0_10] : memref<1x8xf32, #tpu.memory_space<vmem>>, vector<1x8xf32>
    tpu.vector_store %arg3[%c0_9, %c0_10], %21 {strides = array<i32>} : memref<1x8xf32, #tpu.memory_space<vmem>>, vector<1x8xf32>,
    %c0_11 = arith.constant 0 : index
    %c0_12 = arith.constant 0 : index
    %25 = vector.load %arg4[%c0_11, %c0_12] : memref<1x36xf32, #tpu.memory_space<vmem>>, vector<1x36xf32>
    tpu.vector_store %arg4[%c0_11, %c0_12], %11 {strides = array<i32>} : memref<1x36xf32, #tpu.memory_space<vmem>>, vector<1x36xf32>,
    %c0_13 = arith.constant 0 : index
    %c0_14 = arith.constant 0 : index
    %c0_15 = arith.constant 0 : index
    %26 = vector.load %arg1[%c0_13, %c0_14, %c0_15] : memref<9x8x4xf32, #tpu.memory_space<vmem>>, vector<9x8x4xf32>
    %cst_16 = arith.constant 1.600000e+00 : f32
    %27 = arith.divf %cst_16, %23 : f32
    %28 = vector.broadcast %27 : f32 to vector<9x8x4xf32>
    %29 = arith.mulf %26, %28 : vector<9x8x4xf32>
    %c0_17 = arith.constant 0 : index
    %c0_18 = arith.constant 0 : index
    %c0_19 = arith.constant 0 : index
    %30 = vector.load %arg5[%c0_17, %c0_18, %c0_19] : memref<9x8x4xf32, #tpu.memory_space<vmem>>, vector<9x8x4xf32>
    tpu.vector_store %arg5[%c0_17, %c0_18, %c0_19], %29 {strides = array<i32>} : memref<9x8x4xf32, #tpu.memory_space<vmem>>, vector<9x8x4xf32>,
    return
  }
}

</mosaic_0001>

<llo_original>
// kernel: tpu_custom_call.1
$region0: #{tpu_custom_call.1}
  #allocation0 [shape = 'u32[]', space=smem, size = 0x4, offset = 0x4, fixed_abs, tag = 'smem constant byte address 0x4 - core index']
  #allocation1 [shape = 'u32[144,128]{1,0:T(1,128)}', space=vmem, size = 0x12000, scoped, tag = 'internal scratch']
  %s0 = inlined_call_operand.vmem [shape: f32[8,36], index: 0, kind: input, shape index: {}]
  %s1 = inlined_call_operand.vmem [shape: f32[9,8,4], index: 1, kind: input, shape index: {}]
  %s2 = inlined_call_operand.vmem [shape: f32[1,8], index: 2, kind: input, shape index: {}]
  %s3 = inlined_call_operand.hbm [shape: f32[1,8], index: 3, kind: output, shape index: {0}]
  %s4 = inlined_call_operand.hbm [shape: f32[1,36], index: 4, kind: output, shape index: {1}]
  %s5 = inlined_call_operand.vmem [shape: f32[9,8,4], index: 5, kind: output, shape index: {2}]
  %6 = xla_tuple %s3, %s4, %s5
  %s7 = sld [smem:[#allocation0]]
  $region38: #{tpu_custom_call.1} parent=0
    _
  %s9 = ssub.s32 1, %s7
  %s10 = scalar_select 0, %s9, %s7
  $region1: #{tpu_custom_call.1} parent=0
    #allocation2 [shape = 'u8[512]{0}', space=vmem, size = 0x400, scoped, tag = 'output window, operand 0, single buffered']
    #allocation3 [shape = 's32[1]{0}', space=sflag, size = 0x4, scoped, tag = 'scoped memory for tpu_custom_call.1']
    #allocation4 [shape = 'u8[512]{0}', space=vmem, size = 0x400, scoped, tag = 'output window, operand 1, single buffered']
    #allocation5 [shape = 's32[1]{0}', space=sflag, size = 0x4, scoped, tag = 'scoped memory for tpu_custom_call.1']
    %11 = vsyncpa [#allocation3], 0
    %12 = vsyncpa [#allocation5], 0
    // Predicated region
    $region2: #{tpu_custom_call.1} parent=1 // pred_check
      _
    $region3: #{tpu_custom_call.1} parent=1 // pred_check_branch
      %14 = sbr.rel (0) target = $region5
    $region4: #{tpu_custom_call.1} parent=1 // pred_region
      _
    $region5: #{tpu_custom_call.1} parent=1 // pred_fallthru
      _
    // Predicated region
    $region6: #{tpu_custom_call.1} parent=1 // pred_check
      _
    $region7: #{tpu_custom_call.1} parent=1 // pred_check_branch
      %16 = sbr.rel (0) target = $region9
    $region8: #{tpu_custom_call.1} parent=1 // pred_region
      _
    $region9: #{tpu_custom_call.1} parent=1 // pred_fallthru
      _
    // Predicated region
    $region10: #{tpu_custom_call.1} parent=1 // pred_check
      _
    $region11: #{tpu_custom_call.1} parent=1 // pred_check_branch
      %18 = sbr.rel (0) target = $region13
    $region12: #{tpu_custom_call.1} parent=1 // pred_region
      _
    $region13: #{tpu_custom_call.1} parent=1 // pred_fallthru
      _
    %v19 = vld [vmem:[%s0] sm:$0xff]
    %v20 = vld [vmem:[%s2] sm:$0x1]
    %vm21 = vcmask 64512
    %v23 = vsel %vm21, %v20, 0
    %25 = vmatprep.subr.mxu0 0.0
    %26 = vmatpush1.msra.mxu0 %v19
    %27 = vmatprep.subr.mxu0 0.0
    %28 = vmatpush1.msra.mxu0 0.0
    %29 = vmatprep.subr.mxu0 0.0
    %30 = vmatpush1.msra.mxu0 0.0
    %31 = vmatprep.subr.mxu0 0.0
    %32 = vmatpush1.msra.mxu0 0.0
    %33 = vmatprep.subr.mxu0 0.0
    %34 = vmatpush1.msra.mxu0 0.0
    %35 = vmatprep.subr.mxu0 0.0
    %36 = vmatpush1.msra.mxu0 0.0
    %37 = vmatprep.subr.mxu0 0.0
    %38 = vmatpush1.msra.mxu0 0.0
    %39 = vmatprep.subr.mxu0 0.0
    %40 = vmatpush1.msra.mxu0 0.0
    %41 = vmatprep.subr.mxu0 0.0
    %42 = vmatpush1.msra.mxu0 0.0
    %43 = vmatprep.subr.mxu0 0.0
    %44 = vmatpush1.msra.mxu0 0.0
    %45 = vmatprep.subr.mxu0 0.0
    %46 = vmatpush1.msra.mxu0 0.0
    %47 = vmatprep.subr.mxu0 0.0
    %48 = vmatpush1.msra.mxu0 0.0
    %49 = vmatprep.subr.mxu0 0.0
    %50 = vmatpush1.msra.mxu0 0.0
    %51 = vmatprep.subr.mxu0 0.0
    %52 = vmatpush1.msra.mxu0 0.0
    %53 = vmatprep.subr.mxu0 0.0
    %54 = vmatpush1.msra.mxu0 0.0
    %55 = vmatprep.subr.mxu0 0.0
    %56 = vmatpush1.msra.mxu0 0.0
    %57 = vmatprep.subr.mxu0 0.0
    %58 = vmatpush1.msra.mxu0 0.0
    %59 = vmatprep.subr.mxu0 0.0
    %60 = vmatpush1.msra.mxu0 0.0
    %61 = vmatprep.subr.mxu0 0.0
    %62 = vmatpush1.msra.mxu0 0.0
    %63 = vmatprep.subr.mxu0 0.0
    %64 = vmatpush1.msra.mxu0 0.0
    %65 = vmatprep.subr.mxu0 0.0
    %66 = vmatpush1.msra.mxu0 0.0
    %67 = vmatprep.subr.mxu0 0.0
    %68 = vmatpush1.msra.mxu0 0.0
    %69 = vmatprep.subr.mxu0 0.0
    %70 = vmatpush1.msra.mxu0 0.0
    %71 = vmatprep.subr.mxu0 0.0
    %72 = vmatpush1.msra.mxu0 0.0
    %73 = vmatprep.subr.mxu0 0.0
    %74 = vmatpush1.msra.mxu0 0.0
    %75 = vmatprep.subr.mxu0 0.0
    %76 = vmatpush1.msra.mxu0 0.0
    %77 = vmatprep.subr.mxu0 0.0
    %78 = vmatpush1.msra.mxu0 0.0
    %79 = vmatprep.subr.mxu0 0.0
    %80 = vmatpush1.msra.mxu0 0.0
    %81 = vmatprep.subr.mxu0 0.0
    %82 = vmatpush1.msra.mxu0 0.0
    %83 = vmatprep.subr.mxu0 0.0
    %84 = vmatpush1.msra.mxu0 0.0
    %85 = vmatprep.subr.mxu0 0.0
    %86 = vmatpush1.msra.mxu0 0.0
    %87 = vmatprep.subr.mxu0 0.0
    %88 = vmatpush1.msra.mxu0 0.0
    %89 = vmatprep.mubr.f32.mxu0 0.0
    %90 = vmatmul.mubr.f32.gmra.mrb[0].mxu0 %v23
    %v91 = vpop.f32.mrb[0].mxu0
    %v92 = vadd.f32 0.0, %v91
    %v93 = vpop.f32.mrb[0].mxu0
    %94 = vdwg.mxu0
    %v95 = vmul.f32 %v92, %v92
    %vm96 = vcmask 286720
    %v97 = vsel %vm96, %v95, 0.0
    %98 = vadd.xlane.f32.xlu0 %v97
    %v99 = vpop.xlane.xlu0 %98
    %v100 = vrot.slane %v99, 4
    %v101 = vadd.f32 %v99, %v100
    %v102 = vrot.slane %v101, 2
    %v103 = vadd.f32 %v101, %v102
    %v104 = vrot.slane %v103, 1
    %v105 = vadd.f32 %v103, %v104
    %s106 = vtos %v105
    %v107 = vstv %s106
    %v108 = vrsqrt.pop %v107
    %v109 = vmul.f32 %v107, %v108
    %vm110 = vcmp.eq.f32.partialorder %v107, inf
    %v111 = vsel %vm110, %v107, %v109
    %vm112 = vcmp.eq.f32.partialorder %v107, 0.0
    %v113 = vand.u32 %v107, 2147483648
    %v114 = vsel %vm112, %v113, %v111
    %s115 = vtos %v114
    %s116 = sadd.f32 %s115, 1e-12
    %v117 = vstv %s116
    %v118 = vrcp.pop %v117
    %v119 = vmul.f32 %v92, %v118
    %vm120 = vcmask 293888
    %v122 = vsel %vm120, %v119, 0
    %v125 = vsel %vm120, %v19, 0
    %127 = vmatprep.subr.mxu0 0.0
    %128 = vmatpush1.xpose.msra.mxu0 %v125
    %129 = vmatprep.subr.mxu0 0.0
    %130 = vmatpush1.xpose.msra.mxu0 0.0
    %131 = vmatprep.subr.mxu0 0.0
    %132 = vmatpush1.xpose.msra.mxu0 0.0
    %133 = vmatprep.subr.mxu0 0.0
    %134 = vmatpush1.xpose.msra.mxu0 0.0
    %135 = vmatprep.subr.mxu0 0.0
    %136 = vmatpush1.xpose.msra.mxu0 0.0
    %137 = vmatprep.subr.mxu0 0.0
    %138 = vmatpush1.xpose.msra.mxu0 0.0
    %139 = vmatprep.subr.mxu0 0.0
    %140 = vmatpush1.xpose.msra.mxu0 0.0
    %141 = vmatprep.subr.mxu0 0.0
    %142 = vmatpush1.xpose.msra.mxu0 0.0
    %143 = vmatprep.subr.mxu0 0.0
    %144 = vmatpush1.xpose.msra.mxu0 0.0
    %145 = vmatprep.subr.mxu0 0.0
    %146 = vmatpush1.xpose.msra.mxu0 0.0
    %147 = vmatprep.subr.mxu0 0.0
    %148 = vmatpush1.xpose.msra.mxu0 0.0
    %149 = vmatprep.subr.mxu0 0.0
    %150 = vmatpush1.xpose.msra.mxu0 0.0
    %151 = vmatprep.subr.mxu0 0.0
    %152 = vmatpush1.xpose.msra.mxu0 0.0
    %153 = vmatprep.subr.mxu0 0.0
    %154 = vmatpush1.xpose.msra.mxu0 0.0
    %155 = vmatprep.subr.mxu0 0.0
    %156 = vmatpush1.xpose.msra.mxu0 0.0
    %157 = vmatprep.subr.mxu0 0.0
    %158 = vmatpush1.xpose.msra.mxu0 0.0
    %159 = vmatprep.subr.mxu0 0.0
    %160 = vmatpush1.xpose.msra.mxu0 0.0
    %161 = vmatprep.subr.mxu0 0.0
    %162 = vmatpush1.xpose.msra.mxu0 0.0
    %163 = vmatprep.subr.mxu0 0.0
    %164 = vmatpush1.xpose.msra.mxu0 0.0
    %165 = vmatprep.subr.mxu0 0.0
    %166 = vmatpush1.xpose.msra.mxu0 0.0
    %167 = vmatprep.subr.mxu0 0.0
    %168 = vmatpush1.xpose.msra.mxu0 0.0
    %169 = vmatprep.subr.mxu0 0.0
    %170 = vmatpush1.xpose.msra.mxu0 0.0
    %171 = vmatprep.subr.mxu0 0.0
    %172 = vmatpush1.xpose.msra.mxu0 0.0
    %173 = vmatprep.subr.mxu0 0.0
    %174 = vmatpush1.xpose.msra.mxu0 0.0
    %175 = vmatprep.subr.mxu0 0.0
    %176 = vmatpush1.xpose.msra.mxu0 0.0
    %177 = vmatprep.subr.mxu0 0.0
    %178 = vmatpush1.xpose.msra.mxu0 0.0
    %179 = vmatprep.subr.mxu0 0.0
    %180 = vmatpush1.xpose.msra.mxu0 0.0
    %181 = vmatprep.subr.mxu0 0.0
    %182 = vmatpush1.xpose.msra.mxu0 0.0
    %183 = vmatprep.subr.mxu0 0.0
    %184 = vmatpush1.xpose.msra.mxu0 0.0
    %185 = vmatprep.subr.mxu0 0.0
    %186 = vmatpush1.xpose.msra.mxu0 0.0
    %187 = vmatprep.subr.mxu0 0.0
    %188 = vmatpush1.xpose.msra.mxu0 0.0
    %189 = vmatprep.subr.mxu0 0.0
    %190 = vmatpush1.xpose.msra.mxu0 0.0
    %191 = vmatprep.mubr.f32.mxu0 0.0
    %192 = vmatmul.mubr.f32.gmra.mrb[0].mxu0 %v122
    %v193 = vpop.f32.mrb[0].mxu0
    %v194 = vadd.f32 0.0, %v193
    %v195 = vpop.f32.mrb[0].mxu0
    %196 = vdwg.mxu0
    %v197 = vmul.f32 %v194, %v194
    %vm198 = vcmask 57344
    %v199 = vsel %vm198, %v197, 0.0
    %200 = vadd.xlane.f32.xlu0 %v199
    %v201 = vpop.xlane.xlu0 %200
    %v202 = vrot.slane %v201, 4
    %v203 = vadd.f32 %v201, %v202
    %v204 = vrot.slane %v203, 2
    %v205 = vadd.f32 %v203, %v204
    %v206 = vrot.slane %v205, 1
    %v207 = vadd.f32 %v205, %v206
    %s208 = vtos %v207
    %v209 = vstv %s208
    %v210 = vrsqrt.pop %v209
    %v211 = vmul.f32 %v209, %v210
    %vm212 = vcmp.eq.f32.partialorder %v209, inf
    %v213 = vsel %vm212, %v209, %v211
    %vm214 = vcmp.eq.f32.partialorder %v209, 0.0
    %v215 = vand.u32 %v209, 2147483648
    %v216 = vsel %vm214, %v215, %v213
    %s217 = vtos %v216
    %s218 = sadd.f32 %s217, 1e-12
    %v219 = vstv %s218
    %v220 = vrcp.pop %v219
    %v221 = vmul.f32 %v194, %v220
    %v222 = vstv %s218
    %v223 = vrcp.pop %v222
    %s224 = vtos %v223
    %s225 = smul.f32 %s208, %s224
    %226 = vst.msk [vmem:[#allocation2] sm:$0x1] %vm198, %v221
    %227 = vst.msk [vmem:[#allocation4] sm:$0x1] %vm96, %v119
    %v228 = vld [vmem:[%s1] sm:$0xff]
    %v229 = vld [vmem:[%s1 + $0x8] sm:$0xff]
    %v230 = vld [vmem:[%s1 + $0x10] sm:$0xff]
    %v231 = vld [vmem:[%s1 + $0x18] sm:$0xff]
    %v232 = vld [vmem:[%s1 + $0x20] sm:$0xff]
    %v233 = vld [vmem:[%s1 + $0x28] sm:$0xff]
    %v234 = vld [vmem:[%s1 + $0x30] sm:$0xff]
    %v235 = vld [vmem:[%s1 + $0x38] sm:$0xff]
    %v236 = vld [vmem:[%s1 + $0x40] sm:$0xff]
    %v237 = vstv %s225
    %v238 = vrcp.pop %v237
    %s239 = vtos %v238
    %s240 = smul.f32 1.6, %s239
    %v241 = vstv %s240
    %v242 = vmul.f32 %v228, %v241
    %v243 = vmul.f32 %v229, %v241
    %v244 = vmul.f32 %v230, %v241
    %v245 = vmul.f32 %v231, %v241
    %v246 = vmul.f32 %v232, %v241
    %v247 = vmul.f32 %v233, %v241
    %v248 = vmul.f32 %v234, %v241
    %v249 = vmul.f32 %v235, %v241
    %v250 = vmul.f32 %v236, %v241
    %vm251 = vcmask 31744
    %252 = vst.msk [vmem:[%s5] sm:$0xff] %vm251, %v242
    %253 = vst.msk [vmem:[%s5 + $0x8] sm:$0xff] %vm251, %v243
    %254 = vst.msk [vmem:[%s5 + $0x10] sm:$0xff] %vm251, %v244
    %255 = vst.msk [vmem:[%s5 + $0x18] sm:$0xff] %vm251, %v245
    %256 = vst.msk [vmem:[%s5 + $0x20] sm:$0xff] %vm251, %v246
    %257 = vst.msk [vmem:[%s5 + $0x28] sm:$0xff] %vm251, %v247
    %258 = vst.msk [vmem:[%s5 + $0x30] sm:$0xff] %vm251, %v248
    %259 = vst.msk [vmem:[%s5 + $0x38] sm:$0xff] %vm251, %v249
    %260 = vst.msk [vmem:[%s5 + $0x40] sm:$0xff] %vm251, %v250
    // Predicated region
    $region14: #{tpu_custom_call.1} parent=1 // pred_check
      _
    $region15: #{tpu_custom_call.1} parent=1 // pred_check_branch
      %262 = sbr.rel (0) target = $region17
    $region16: #{tpu_custom_call.1} parent=1 // pred_region
      %s264 = ssub.s32 16, 16
      %265 = vsyncadd [#allocation3], %s264
      %s267 = sshll.u32 [#allocation2], 4
      %s268 = int_to_ptr.vmem [resolvable:$true] %s267
      %270 = dma.vmem_to_hbm [thread:$0]  %s268, 16, %s3, [#allocation3]
    $region17: #{tpu_custom_call.1} parent=1 // pred_fallthru
      _
    // Predicated region
    $region18: #{tpu_custom_call.1} parent=1 // pred_check
      _
    $region19: #{tpu_custom_call.1} parent=1 // pred_check_branch
      %272 = sbr.rel (0) target = $region21
    $region20: #{tpu_custom_call.1} parent=1 // pred_region
      %s274 = ssub.s32 16, 16
      %275 = vsyncadd [#allocation5], %s274
      %s277 = sshll.u32 [#allocation4], 4
      %s278 = int_to_ptr.vmem [resolvable:$true] %s277
      %280 = dma.vmem_to_hbm [thread:$0]  %s278, 16, %s4, [#allocation5]
    $region21: #{tpu_custom_call.1} parent=1 // pred_fallthru
      _
    // Predicated region
    $region22: #{tpu_custom_call.1} parent=1 // pred_check
      _
    $region23: #{tpu_custom_call.1} parent=1 // pred_check_branch
      %282 = sbr.rel (0) target = $region25
    $region24: #{tpu_custom_call.1} parent=1 // pred_region
      _
    $region25: #{tpu_custom_call.1} parent=1 // pred_fallthru
      _
    // Predicated region
    $region26: #{tpu_custom_call.1} parent=1 // pred_check
      _
    $region27: #{tpu_custom_call.1} parent=1 // pred_check_branch
      %284 = sbr.rel (0) target = $region29
    $region28: #{tpu_custom_call.1} parent=1 // pred_region
      %285 = dma.done [#allocation3], 16
    $region29: #{tpu_custom_call.1} parent=1 // pred_fallthru
      _
    // Predicated region
    $region30: #{tpu_custom_call.1} parent=1 // pred_check
      _
    $region31: #{tpu_custom_call.1} parent=1 // pred_check_branch
      %287 = sbr.rel (0) target = $region33
    $region32: #{tpu_custom_call.1} parent=1 // pred_region
      %288 = dma.done [#allocation5], 16
    $region33: #{tpu_custom_call.1} parent=1 // pred_fallthru
      _
    // Predicated region
    $region34: #{tpu_custom_call.1} parent=1 // pred_check
      _
    $region35: #{tpu_custom_call.1} parent=1 // pred_check_branch
      %290 = sbr.rel (0) target = $region37
    $region36: #{tpu_custom_call.1} parent=1 // pred_region
      _
    $region37: #{tpu_custom_call.1} parent=1 // pred_fallthru
      _
    %291 = vsyncpa [#allocation3], 1
    %292 = vsyncpa [#allocation5], 1

</llo_original>
